<compile_context>
chip_gen: v5e
topology: v5e:2x2
jax: 0.10.0
libtpu: 0.0.40
codegen_flags: <defaults>
</compile_context>

<pallas_src>
import jax
import jax.numpy as jnp
from jax import lax
from jax.experimental import pallas as pl
from jax.experimental.pallas import tpu as pltpu

_LANES = 128
_SUBLANES = 8
_SUBLANE_PACK = 32                      # legal sublane multiple for f32/bf16/int8 blocks
_DEFAULT_BLOCK_BYTES = 2 * 1024 * 1024  # ~2 MiB per input per grid step
_MAX_CHUNK_ROWS = 512                   # bounds in-kernel f32 temporaries to <= 256 KiB
_VMEM_LIMIT_BYTES = 32 * 1024 * 1024


def _round_up(x, m):
    return (x + m - 1) // m * m


def _maybe_core_parallel(n_splits):
    """Use CORE_PARALLEL only on 2-TC chips (v7x-family); neutral elsewhere."""
    if n_splits < 2:
        return False
    try:
        kind = jax.devices()[0].device_kind.lower()
    except Exception:
        return False
    return ("v7" in kind) or ("7x" in kind)


def _make_l1_kernel(*, rows, tile_rows, chunk_rows, steps, ragged):
    """Kernel: accumulate per-(sublane, lane) partial sums of |p - t| into o_ref.

    Grid = (n_splits, steps).  Axis 0 is shardable across TensorCores, axis 1 is
    the reduction axis; the (1, 8, 128) output block stays resident across it.
    """
    n_chunks = tile_rows // chunk_rows

    def kernel(p_ref, t_ref, o_ref):
        i = pl.program_id(0)
        j = pl.program_id(1)

        @pl.when(j == 0)
        def _():
            o_ref[...] = jnp.zeros_like(o_ref)

        if ragged:
            # Unclamped global row offset of this block.  Duplicated / overhanging
            # blocks get offsets >= rows and are therefore fully masked below.
            row0 = (i * steps + j) * tile_rows
            row_iota = lax.broadcasted_iota(jnp.int32, (chunk_rows, _LANES), 0)

        def chunk_body(c, acc):
            r = pl.multiple_of(c * chunk_rows, chunk_rows)
            pv = p_ref[pl.ds(r, chunk_rows), :].astype(jnp.float32)
            tv = t_ref[pl.ds(r, chunk_rows), :].astype(jnp.float32)
            d = jnp.abs(pv - tv)
            if ragged:
                g = row0 + r + row_iota
                # Select (not multiply): NaN/garbage in OOB rows is discarded.
                d = jnp.where(g < rows, d, 0.0)
            # (chunk_rows, 128) -> (chunk_rows // 8, 8, 128); the sum over the
            # leading axis lowers to a chain of elementwise vreg adds (VPU).
            return acc + d.reshape(chunk_rows // _SUBLANES, _SUBLANES, _LANES).sum(axis=0)

        acc0 = jnp.zeros((_SUBLANES, _LANES), jnp.float32)
        acc = lax.fori_loop(0, n_chunks, chunk_body, acc0, unroll=True)
        o_ref[...] += acc[None]

    return kernel


def l1_loss_pallas(pred, target, *, block_bytes=_DEFAULT_BLOCK_BYTES, n_splits=2):
    """mean(|pred - target|) over all elements (nn.L1Loss, 'mean' reduction)."""
    assert pred.shape == target.shape, (pred.shape, target.shape)
    n = pred.size
    assert n > 0

    # Stream the original dtype from HBM; the f32 cast happens per-tile in-kernel.
    p = pred.reshape(-1)
    t = target.reshape(-1)

    rem = n % _LANES
    main = n - rem

    total = jnp.float32(0.0)

    if main > 0:
        if rem:
            # TODO(synk): a ragged-lane tail (< 128 elems) forces one slice copy of
            # the prefix; avoiding it entirely would need manual DMA from a 1-D
            # HBM ref (memory_space=pl.ANY).  No copy at all when n % 128 == 0.
            p_main = lax.slice(p, (0,), (main,))
            t_main = lax.slice(t, (0,), (main,))
        else:
            p_main, t_main = p, t

        rows = main // _LANES
        p2 = p_main.reshape(rows, _LANES)
        t2 = t_main.reshape(rows, _LANES)

        itemsize = jnp.dtype(pred.dtype).itemsize
        # Dtype-aware block sizing: fixed bytes per input per step, rounded to a
        # 32-sublane multiple (legal for f32/bf16/int8 packing).
        tile_rows = max(_SUBLANE_PACK, block_bytes // (_LANES * itemsize))
        tile_rows = min(tile_rows, _round_up(rows, _SUBLANE_PACK))
        tile_rows = _round_up(tile_rows, _SUBLANE_PACK)
        chunk_rows = min(_MAX_CHUNK_ROWS, tile_rows)
        tile_rows = _round_up(tile_rows, chunk_rows)

        num_blocks = pl.cdiv(rows, tile_rows)
        if num_blocks < n_splits:
            n_splits = 1
        steps = pl.cdiv(num_blocks, n_splits)
        ragged = (n_splits * steps * tile_rows) != rows

        kernel = _make_l1_kernel(rows=rows, tile_rows=tile_rows,
                                 chunk_rows=chunk_rows, steps=steps, ragged=ragged)

        def make_in_spec():
            # Clamp so duplicated / overhanging block indices never start a DMA
            # wholly outside the array; their contribution is masked in-kernel.
            return pl.BlockSpec(
                (tile_rows, _LANES),
                lambda i, j: (jnp.minimum(i * steps + j, num_blocks - 1), 0),
            )

        if _maybe_core_parallel(n_splits):
            dim_sems = (pltpu.CORE_PARALLEL, pltpu.ARBITRARY)
        else:
            dim_sems = ("parallel", "arbitrary")

        cost = pl.CostEstimate(
            flops=3 * main,
            transcendentals=0,
            bytes_accessed=2 * main * itemsize + n_splits * _SUBLANES * _LANES * 4,
        )

        partials = pl.pallas_call(
            kernel,
            out_shape=jax.ShapeDtypeStruct((n_splits, _SUBLANES, _LANES), jnp.float32),
            grid_spec=pltpu.PrefetchScalarGridSpec(
                num_scalar_prefetch=0,
                grid=(n_splits, steps),
                in_specs=[make_in_spec(), make_in_spec()],
                out_specs=pl.BlockSpec((1, _SUBLANES, _LANES), lambda i, j: (i, 0, 0)),
            ),
            compiler_params=pltpu.CompilerParams(
                dimension_semantics=dim_sems,
                vmem_limit_bytes=_VMEM_LIMIT_BYTES,
            ),
            cost_estimate=cost,
        )(p2, t2)
        total = total + jnp.sum(partials)

    if rem:
        # < 128 trailing elements: tiny jnp epilogue, negligible traffic.
        tp = lax.slice(p, (main,), (n,)).astype(jnp.float32)
        tt = lax.slice(t, (main,), (n,)).astype(jnp.float32)
        total = total + jnp.sum(jnp.abs(tp - tt))

    # Normalize by the TRUE element count.
    return total / jnp.float32(n)


def get_loss_forward(pred, target, trans_feat=None, weight=None, epoch=None):
    """Matches get_loss.forward: weight is overridden to 1 inside forward."""
    del trans_feat, epoch
    weight = 1.0  # the PyTorch module hard-resets weight = 1
    return weight * l1_loss_pallas(pred, target)


if __name__ == "__main__":
    key = jax.random.PRNGKey(0)
    keys = jax.random.split(key, 10)

    def ref_l1(a, b):
        return jnp.mean(jnp.abs(a.astype(jnp.float32) - b.astype(jnp.float32)))

    # 1) Basic case through the module-equivalent forward (n % 128 == 0, copy-free).
    pred = jax.random.normal(keys[0], (2, 4, 16, 16), dtype=jnp.float32)
    target = jax.random.normal(keys[1], (2, 4, 16, 16), dtype=jnp.float32)
    loss = jax.block_until_ready(get_loss_forward(pred, target, None, 0.5, 3))
    assert jnp.allclose(loss, ref_l1(pred, target), rtol=1e-5, atol=1e-6), loss

    # 2) Ragged lane count (1365 = 10*128 + 85): kernel (masked rows) + tiny tail.
    p2 = jax.random.normal(keys[2], (3, 5, 91), dtype=jnp.float32)
    t2 = jax.random.normal(keys[3], (3, 5, 91), dtype=jnp.float32)
    l2 = jax.block_until_ready(l1_loss_pallas(p2, t2))
    assert jnp.allclose(l2, ref_l1(p2, t2), rtol=1e-5, atol=1e-6), l2

    # 3) Multi-block split path with a duplicated (fully-masked) trailing block:
    #    65 rows with forced 32-row tiles -> 3 valid blocks over a (2, 2) grid.
    p3 = jax.random.normal(keys[4], (13, 640), dtype=jnp.float32)
    t3 = jax.random.normal(keys[5], (13, 640), dtype=jnp.float32)
    l3 = jax.block_until_ready(l1_loss_pallas(p3, t3, block_bytes=32 * _LANES * 4))
    assert jnp.allclose(l3, ref_l1(p3, t3), rtol=1e-5, atol=1e-6), l3

    # 4) bf16 inputs (dtype-aware tiling, unmasked path; accumulation in f32).
    p4 = jax.random.normal(keys[6], (4, 8, 512), dtype=jnp.bfloat16)
    t4 = jax.random.normal(keys[7], (4, 8, 512), dtype=jnp.bfloat16)
    l4 = jax.block_until_ready(l1_loss_pallas(p4, t4, block_bytes=64 * _LANES * 2))
    assert jnp.allclose(l4, ref_l1(p4, t4), rtol=2e-2, atol=2e-3), l4

    # 5) Fewer than 128 elements: pure jnp tail path.
    p5 = jax.random.normal(keys[8], (3, 5, 7), dtype=jnp.float32)
    t5 = jax.random.normal(keys[9], (3, 5, 7), dtype=jnp.float32)
    l5 = jax.block_until_ready(l1_loss_pallas(p5, t5))
    assert jnp.allclose(l5, ref_l1(p5, t5), rtol=1e-5, atol=1e-6), l5

    print("KERNEL_OK")
</pallas_src>

<mosaic_0001>
module attributes {stable_mosaic.version = 11 : i64} {
  func.func @kernel(%arg0: i32, %arg1: i32, %arg2: memref<32x128xf32, #tpu.memory_space<vmem>>, %arg3: memref<32x128xf32, #tpu.memory_space<vmem>>, %arg4: memref<1x8x128xf32, #tpu.memory_space<vmem>>) attributes {dimension_semantics = [#tpu.dimension_semantics<parallel>, #tpu.dimension_semantics<arbitrary>], iteration_bounds = array<i64: 1, 1>, scalar_prefetch = 0 : i64, scratch_operands = 0 : i64, tpu.core_type = #tpu.core_type<tc>, window_params = [{transform_indices = @transform_0, window_bounds = array<i64: 32, 128>}, {transform_indices = @transform_1, window_bounds = array<i64: 32, 128>}, {transform_indices = @transform_2, window_bounds = array<i64: 1, 8, 128>}]} {
    %c0_i32 = arith.constant 0 : i32
    %0 = arith.cmpi eq, %arg1, %c0_i32 : i32
    %1 = arith.extui %0 : i1 to i32
    %c0_i32_0 = arith.constant 0 : i32
    %2 = arith.cmpi ne, %1, %c0_i32_0 : i32
    scf.if %2 {
      %cst_13 = arith.constant 0.000000e+00 : f32
      %30 = vector.broadcast %cst_13 : f32 to vector<1x8x128xf32>
      %c0_14 = arith.constant 0 : index
      %c0_15 = arith.constant 0 : index
      %c0_16 = arith.constant 0 : index
      %31 = vector.load %arg4[%c0_14, %c0_15, %c0_16] : memref<1x8x128xf32, #tpu.memory_space<vmem>>, vector<1x8x128xf32>
      tpu.vector_store %arg4[%c0_14, %c0_15, %c0_16], %30 {strides = array<i32>} : memref<1x8x128xf32, #tpu.memory_space<vmem>>, vector<1x8x128xf32>,
    } else {
    }
    %c1_i32 = arith.constant 1 : i32
    %3 = arith.muli %arg0, %c1_i32 : i32
    %4 = arith.addi %3, %arg1 : i32
    %c32_i32 = arith.constant 32 : i32
    %5 = arith.muli %4, %c32_i32 : i32
    %6 = tpu.iota {dimensions = array<i32: 0>} : vector<32x128xi32>
    %cst = arith.constant 0.000000e+00 : f32
    %7 = vector.broadcast %cst : f32 to vector<8x128xf32>
    %c0_i32_1 = arith.constant 0 : i32
    %c32_i32_2 = arith.constant 32 : i32
    %8 = arith.muli %c0_i32_1, %c32_i32_2 : i32
    %9 = tpu.assume_multiple %8, 32 : i32
    %10 = arith.index_cast %9 : i32 to index
    %c0 = arith.constant 0 : index
    %11 = vector.load %arg2[%10, %c0] : memref<32x128xf32, #tpu.memory_space<vmem>>, vector<32x128xf32>
    %12 = arith.index_cast %9 : i32 to index
    %c0_3 = arith.constant 0 : index
    %13 = vector.load %arg3[%12, %c0_3] : memref<32x128xf32, #tpu.memory_space<vmem>>, vector<32x128xf32>
    %14 = arith.subf %11, %13 : vector<32x128xf32>
    %15 = math.absf %14 : vector<32x128xf32>
    %16 = arith.addi %5, %9 : i32
    %17 = vector.broadcast %16 : i32 to vector<32x128xi32>
    %18 = arith.addi %17, %6 : vector<32x128xi32>
    %c16_i32 = arith.constant 16 : i32
    %19 = vector.broadcast %c16_i32 : i32 to vector<32x128xi32>
    %20 = arith.cmpi slt, %18, %19 : vector<32x128xi32>
    %cst_4 = arith.constant 0.000000e+00 : f32
    %21 = vector.broadcast %cst_4 : f32 to vector<32x128xf32>
    %22 = arith.select %20, %15, %21 : vector<32x128xi1>, vector<32x128xf32>
    %23 = vector.shape_cast %22 : vector<32x128xf32> to vector<4x8x128xf32>
    %cst_5 = arith.constant dense<0.000000e+00> : vector<8x128xf32>
    %24 = vector.multi_reduction <add>, %23, %cst_5 [0] : vector<4x8x128xf32> to vector<8x128xf32>
    %25 = arith.addf %7, %24 : vector<8x128xf32>
    %c1_i32_6 = arith.constant 1 : i32
    %c0_7 = arith.constant 0 : index
    %c0_8 = arith.constant 0 : index
    %c0_9 = arith.constant 0 : index
    %26 = vector.load %arg4[%c0_7, %c0_8, %c0_9] : memref<1x8x128xf32, #tpu.memory_space<vmem>>, vector<1x8x128xf32>
    %27 = vector.shape_cast %25 : vector<8x128xf32> to vector<1x8x128xf32>
    %28 = arith.addf %26, %27 : vector<1x8x128xf32>
    %c0_10 = arith.constant 0 : index
    %c0_11 = arith.constant 0 : index
    %c0_12 = arith.constant 0 : index
    %29 = vector.load %arg4[%c0_10, %c0_11, %c0_12] : memref<1x8x128xf32, #tpu.memory_space<vmem>>, vector<1x8x128xf32>
    tpu.vector_store %arg4[%c0_10, %c0_11, %c0_12], %28 {strides = array<i32>} : memref<1x8x128xf32, #tpu.memory_space<vmem>>, vector<1x8x128xf32>,
    return
  }
  func.func @transform_0(%arg0: i32, %arg1: i32) -> (i32, i32) {
    %c1_i32 = arith.constant 1 : i32
    %0 = arith.muli %arg0, %c1_i32 : i32
    %1 = arith.addi %0, %arg1 : i32
    %c0_i32 = arith.constant 0 : i32
    %2 = arith.minsi %1, %c0_i32 : i32
    %c0_i32_0 = arith.constant 0 : i32
    %c0_i32_1 = arith.constant 0 : i32
    return %2, %c0_i32_0 : i32, i32
  }
  func.func @transform_1(%arg0: i32, %arg1: i32) -> (i32, i32) {
    %c1_i32 = arith.constant 1 : i32
    %0 = arith.muli %arg0, %c1_i32 : i32
    %1 = arith.addi %0, %arg1 : i32
    %c0_i32 = arith.constant 0 : i32
    %2 = arith.minsi %1, %c0_i32 : i32
    %c0_i32_0 = arith.constant 0 : i32
    %c0_i32_1 = arith.constant 0 : i32
    return %2, %c0_i32_0 : i32, i32
  }
  func.func @transform_2(%arg0: i32, %arg1: i32) -> (i32, i32, i32) {
    %c0_i32 = arith.constant 0 : i32
    %c0_i32_0 = arith.constant 0 : i32
    %c0_i32_1 = arith.constant 0 : i32
    return %arg0, %c0_i32, %c0_i32_0 : i32, i32, i32
  }
}

</mosaic_0001>

<llo_original>
// kernel: tpu_custom_call.1
$region0: #{tpu_custom_call.1}
  #allocation0 [shape = 'u32[]', space=smem, size = 0x4, offset = 0x4, fixed_abs, tag = 'smem constant byte address 0x4 - core index']
  #allocation1 [shape = 'u32[72,128]{1,0:T(1,128)}', space=vmem, size = 0x9000, scoped, tag = 'internal scratch']
  %s0 = inlined_call_operand.hbm [shape: f32[16,128], index: 0, kind: input, shape index: {}]
  %s1 = inlined_call_operand.hbm [shape: f32[16,128], index: 1, kind: input, shape index: {}]
  %s2 = inlined_call_operand.hbm [shape: f32[1,8,128], index: 2, kind: output, shape index: {}]
  %s3 = sld [smem:[#allocation0]]
  $region30: #{tpu_custom_call.1} parent=0
    _
  %s5 = ssub.s32 1, %s3
  %s6 = scalar_select 0, %s5, %s3
  $region1: #{tpu_custom_call.1} parent=0
    #allocation2 [shape = 'u8[16384]{0}', space=vmem, size = 0x4000, scoped, tag = 'input window, operand 0, single buffered']
    #allocation3 [shape = 's32[1]{0}', space=sflag, size = 0x4, scoped, tag = 'scoped memory for tpu_custom_call.1']
    #allocation4 [shape = 's32[1]{0}', space=sflag, size = 0x4, scoped, tag = 'scoped memory for tpu_custom_call.1']
    #allocation5 [shape = 'u8[16384]{0}', space=vmem, size = 0x4000, scoped, tag = 'input window, operand 1, single buffered']
    #allocation6 [shape = 's32[1]{0}', space=sflag, size = 0x4, scoped, tag = 'scoped memory for tpu_custom_call.1']
    #allocation7 [shape = 'u8[4096]{0}', space=vmem, size = 0x1000, scoped, tag = 'output window, operand 0, single buffered']
    %7 = vsyncpa [#allocation3], 0
    %8 = vsyncpa [#allocation6], 0
    %9 = vsyncpa [#allocation4], 0
    // Predicated region
    $region2: #{tpu_custom_call.1} parent=1 // pred_check
      _
    $region3: #{tpu_custom_call.1} parent=1 // pred_check_branch
      %11 = sbr.rel (0) target = $region5
    $region4: #{tpu_custom_call.1} parent=1 // pred_region
      %s12 = sadd.s32 0, 0
      %p13 = scmp.lt.s32.totalorder %s12, 0
      %s14 = scalar_select %p13, %s12, 0
      %s15 = smul.u32 4, %s14
      %s16 = ssub.s32 2, %s15
      %s17 = smul.u32 8, %s16
      %s18 = ssub.s32 32, %s17
      %s19 = sshll.u32 %s18, 4
      %20 = vsyncadd [#allocation3], %s19
      %p21 = scmp.ne.s32.totalorder 0, %s17
      %s22 = smul.addr %s15, 8
      %s23 = scalar_lea.hbm %s0, %s22
      %s24 = smul.u32 8, %s16
      %s25 = sshll.u32 %s23, 4
      %s26 = int_to_ptr.hbm [resolvable:$true] %s25
      %s27 = sshll.u32 [#allocation2], 4
      %s28 = int_to_ptr.vmem [resolvable:$true] %s27
      %s29 = sshll.u32 %s24, 4
      %33 = dma.hbm_to_vmem [thread:$0]  (%p21), %s26, %s29, %s28, [#allocation3], 128, 128, 8
    $region5: #{tpu_custom_call.1} parent=1 // pred_fallthru
      _
    // Predicated region
    $region6: #{tpu_custom_call.1} parent=1 // pred_check
      _
    $region7: #{tpu_custom_call.1} parent=1 // pred_check_branch
      %35 = sbr.rel (0) target = $region9
    $region8: #{tpu_custom_call.1} parent=1 // pred_region
      %s36 = sadd.s32 0, 0
      %p37 = scmp.lt.s32.totalorder %s36, 0
      %s38 = scalar_select %p37, %s36, 0
      %s39 = smul.u32 4, %s38
      %s40 = ssub.s32 2, %s39
      %s41 = smul.u32 8, %s40
      %s42 = ssub.s32 32, %s41
      %s43 = sshll.u32 %s42, 4
      %44 = vsyncadd [#allocation6], %s43
      %p45 = scmp.ne.s32.totalorder 0, %s41
      %s46 = smul.addr %s39, 8
      %s47 = scalar_lea.hbm %s1, %s46
      %s48 = smul.u32 8, %s40
      %s49 = sshll.u32 %s47, 4
      %s50 = int_to_ptr.hbm [resolvable:$true] %s49
      %s51 = sshll.u32 [#allocation5], 4
      %s52 = int_to_ptr.vmem [resolvable:$true] %s51
      %s53 = sshll.u32 %s48, 4
      %57 = dma.hbm_to_vmem [thread:$0]  (%p45), %s50, %s53, %s52, [#allocation6], 128, 128, 8
    $region9: #{tpu_custom_call.1} parent=1 // pred_fallthru
      _
    // Predicated region
    $region10: #{tpu_custom_call.1} parent=1 // pred_check
      _
    $region11: #{tpu_custom_call.1} parent=1 // pred_check_branch
      %59 = sbr.rel (0) target = $region13
    $region12: #{tpu_custom_call.1} parent=1 // pred_region
      %61 = dma.done [#allocation3], 512
    $region13: #{tpu_custom_call.1} parent=1 // pred_fallthru
      _
    // Predicated region
    $region14: #{tpu_custom_call.1} parent=1 // pred_check
      _
    $region15: #{tpu_custom_call.1} parent=1 // pred_check_branch
      %63 = sbr.rel (0) target = $region17
    $region16: #{tpu_custom_call.1} parent=1 // pred_region
      %65 = dma.done [#allocation6], 512
    $region17: #{tpu_custom_call.1} parent=1 // pred_fallthru
      _
    %s66 = sadd.s32 0, 0
    %p67 = scmp.lt.s32.totalorder %s66, 0
    %s68 = scalar_select %p67, %s66, 0
    %s69 = smul.u32 4, %s68
    %s70 = ssub.s32 2, %s69
    %s71 = smul.u32 8, %s70
    %s72 = sadd.s32 0, 0
    %p73 = scmp.lt.s32.totalorder %s72, 0
    %s74 = scalar_select %p73, %s72, 0
    %s75 = smul.u32 4, %s74
    %s76 = ssub.s32 2, %s75
    %s77 = smul.u32 8, %s76
    %p78 = scmp.eq.s32.totalorder 0, 0
    // Predicated region
    $region18: #{tpu_custom_call.1} parent=1 // pred_check
      %p79 = pneg %p78
    $region19: #{tpu_custom_call.1} parent=1 // pred_check_branch
      %81 = sbr.rel (%p79) target = $region21
    $region20: #{tpu_custom_call.1} parent=1 // pred_region
      %82 = vst [vmem:[#allocation7] sm:$0xff] 0.0
    $region21: #{tpu_custom_call.1} parent=1 // pred_fallthru
      _
    %s83 = sadd.s32 0, 0
    %s84 = smul.u32 %s83, 32
    %v85 = vlaneseq
    %v86 = vshrl.u32 %v85, 7
    %v87 = vadd.s32 %v86, 8
    %v88 = vadd.s32 %v86, 16
    %v89 = vadd.s32 %v86, 24
    %v90 = vld [vmem:[#allocation2] sm:$0xff]
    %v91 = vld [vmem:[#allocation2 + $0x8] sm:$0xff]
    %v92 = vld [vmem:[#allocation2 + $0x10] sm:$0xff]
    %v93 = vld [vmem:[#allocation2 + $0x18] sm:$0xff]
    %v94 = vld [vmem:[#allocation5] sm:$0xff]
    %v95 = vld [vmem:[#allocation5 + $0x8] sm:$0xff]
    %v96 = vld [vmem:[#allocation5 + $0x10] sm:$0xff]
    %v97 = vld [vmem:[#allocation5 + $0x18] sm:$0xff]
    %v98 = vsub.f32 %v90, %v94
    %v99 = vsub.f32 %v91, %v95
    %v100 = vsub.f32 %v92, %v96
    %v101 = vsub.f32 %v93, %v97
    %v102 = vand.u32 2147483647, %v98
    %v103 = vand.u32 2147483647, %v99
    %v104 = vand.u32 2147483647, %v100
    %v105 = vand.u32 2147483647, %v101
    %s106 = sadd.s32 %s84, 0
    %v107 = vstv %s106
    %v108 = vadd.s32 %v107, %v86
    %v109 = vadd.s32 %v107, %v87
    %v110 = vadd.s32 %v107, %v88
    %v111 = vadd.s32 %v107, %v89
    %vm112 = vcmp.lt.s32.totalorder %v108, 16
    %vm113 = vcmp.lt.s32.totalorder %v109, 16
    %vm114 = vcmp.lt.s32.totalorder %v110, 16
    %vm115 = vcmp.lt.s32.totalorder %v111, 16
    %v116 = vsel %vm112, %v102, 0.0
    %v117 = vsel %vm113, %v103, 0.0
    %v118 = vsel %vm114, %v104, 0.0
    %v119 = vsel %vm115, %v105, 0.0
    %v120 = vadd.f32 %v116, %v117
    %v121 = vadd.f32 %v120, %v118
    %v122 = vadd.f32 %v121, %v119
    %v123 = vadd.f32 %v122, 0.0
    %v124 = vld [vmem:[#allocation7] sm:$0xff]
    %v125 = vadd.f32 %v124, %v123
    %126 = vst [vmem:[#allocation7] sm:$0xff] %v125
    // Predicated region
    $region22: #{tpu_custom_call.1} parent=1 // pred_check
      _
    $region23: #{tpu_custom_call.1} parent=1 // pred_check_branch
      %128 = sbr.rel (0) target = $region25
    $region24: #{tpu_custom_call.1} parent=1 // pred_region
      %130 = vsyncadd [#allocation4], 0
      %s132 = sshll.u32 [#allocation7], 4
      %s133 = int_to_ptr.vmem [resolvable:$true] %s132
      %s134 = sshll.u32 %s2, 4
      %s135 = int_to_ptr.hbm [resolvable:$true] %s134
      %137 = dma.vmem_to_hbm [thread:$0]  %s133, 128, %s135, [#allocation4]
    $region25: #{tpu_custom_call.1} parent=1 // pred_fallthru
      _
    // Predicated region
    $region26: #{tpu_custom_call.1} parent=1 // pred_check
      _
    $region27: #{tpu_custom_call.1} parent=1 // pred_check_branch
      %139 = sbr.rel (0) target = $region29
    $region28: #{tpu_custom_call.1} parent=1 // pred_region
      %141 = dma.done [#allocation4], 128
    $region29: #{tpu_custom_call.1} parent=1 // pred_fallthru
      _
    %142 = vsyncpa [#allocation3], 1
    %143 = vsyncpa [#allocation6], 1
    %144 = vsyncpa [#allocation4], 1

</llo_original>
